<compile_context>
chip_gen: v7x
topology: tpu7x:2x2x1
jax: 0.10.0
libtpu: 0.0.40
codegen_flags: <defaults>
</compile_context>

<pallas_src>
import jax
import jax.numpy as jnp
from jax.experimental import pallas as pl
from jax.experimental.pallas import tpu as pltpu

EPS = 1e-5  # PyTorch BatchNorm1d default


def _round_up(x, m):
    return ((x + m - 1) // m) * m


def _pad_to(a, shape):
    return jnp.pad(a, [(0, s - d) for d, s in zip(a.shape, shape)])


def mlp_kernel(x_ref, w1_ref, w2_ref, gamma_ref, beta_ref, o_ref, h_ref, acc_ref):
    ki = pl.program_id(0)          # hidden-tile axis (outer, reduction of 2nd GEMM)
    oi = pl.program_id(1)          # out-tile axis (inner)
    n_ki = pl.num_programs(0)
    n_oi = pl.num_programs(1)
    to = w2_ref.shape[0]           # out-tile width (static, multiple of 128)

    @pl.when((ki == 0) & (oi == 0))
    def _init():
        acc_ref[...] = jnp.zeros_like(acc_ref)

    # ---- First linear + BatchNorm1d + ReLU: computed ONCE per hidden tile --------
    # (reused for every out tile; this is the dedup fix from the perf review).
    @pl.when(oi == 0)
    def _hidden():
        # h = x @ W1[ki].T  as an NT matmul (contract on last dims, no in-kernel .T)
        h = jax.lax.dot_general(
            x_ref[...], w1_ref[...],
            dimension_numbers=(((1,), (1,)), ((), ())),
            preferred_element_type=jnp.float32)
        # Training-mode BN over the FULL (un-tiled) batch axis; one-pass variance.
        mean = jnp.mean(h, axis=0, keepdims=True)
        var = jnp.maximum(jnp.mean(h * h, axis=0, keepdims=True) - mean * mean, 0.0)
        scale = gamma_ref[...].astype(jnp.float32) * jax.lax.rsqrt(var + EPS)
        shift = beta_ref[...].astype(jnp.float32) - mean * scale
        h_ref[...] = jnp.maximum(h * scale + shift, 0.0).astype(h_ref.dtype)

    # ---- Second linear: acc[:, oi-tile] += h_act @ W2[oi, ki].T (NT matmul) ------
    partial = jax.lax.dot_general(
        h_ref[...], w2_ref[...],
        dimension_numbers=(((1,), (1,)), ((), ())),
        preferred_element_type=jnp.float32)
    start = pl.multiple_of(oi * to, 128)
    acc_ref[:, pl.ds(start, to)] += partial

    # ---- Single lane-dense writeback of the whole output at the very last step ---
    @pl.when((ki == n_ki - 1) & (oi == n_oi - 1))
    def _store():
        o_ref[...] = acc_ref[...].astype(o_ref.dtype)


def mlp_forward(x, w1, w2, gamma, beta, *, hidden_tile=None, out_tile=256,
                compute_dtype=jnp.bfloat16):
    """x: [B, in], w1: [hidden, in], w2: [out, hidden], gamma/beta: [hidden]."""
    B, in_dim = x.shape
    hidden_dim = w1.shape[0]
    out_dim = w2.shape[0]
    out_dtype = x.dtype

    # Generation-aware VMEM budget (v5e/v6e: 128 MiB physical, v7x: 64 MiB).
    try:
        vmem_cap = int(pltpu.get_tpu_info().vmem_capacity_bytes)
    except Exception:
        vmem_cap = 64 * 1024 * 1024
    vmem_limit = min(int(vmem_cap * 0.85), 112 * 1024 * 1024)
    if hidden_tile is None:
        hidden_tile = 1024 if vmem_cap >= 100 * 1024 * 1024 else 512

    # Pad feature dims to multiples of 128 lanes; the batch stays whole (BN stats).
    in_p = _round_up(in_dim, 128)
    th = _round_up(min(hidden_tile, _round_up(hidden_dim, 128)), 128)
    to = _round_up(min(out_tile, _round_up(out_dim, 128)), 128)
    hid_p = _round_up(hidden_dim, th)
    out_p = _round_up(out_dim, to)

    xp = _pad_to(x, (B, in_p))
    w1p = _pad_to(w1, (hid_p, in_p))
    w2p = _pad_to(w2, (out_p, hid_p))
    gp = _pad_to(gamma, (hid_p,)).reshape(1, hid_p)
    bp = _pad_to(beta, (hid_p,)).reshape(1, hid_p)

    if compute_dtype is not None:
        # bf16 MXU operands by default (918/996 TF/s on v6e/v7x, 197 TF/s on v5e,
        # half the HBM/VMEM bytes).  Accumulation stays f32 inside the kernel.
        xp = xp.astype(compute_dtype)
        w1p = w1p.astype(compute_dtype)
        w2p = w2p.astype(compute_dtype)

    n_hid_tiles = hid_p // th
    n_out_tiles = out_p // to
    grid = (n_hid_tiles, n_out_tiles)   # ki outer (reduction), oi inner

    nbytes = lambda a: a.size * a.dtype.itemsize
    cost = pl.CostEstimate(
        flops=2 * B * in_p * hid_p + 2 * B * hid_p * out_p,   # each GEMM exactly once
        transcendentals=hid_p,                                # one rsqrt per hidden feat
        bytes_accessed=(nbytes(xp) + nbytes(w1p) + nbytes(w2p) + nbytes(gp)
                        + nbytes(bp) + B * out_p * jnp.dtype(out_dtype).itemsize),
    )

    out_padded = pl.pallas_call(
        mlp_kernel,
        out_shape=jax.ShapeDtypeStruct((B, out_p), out_dtype),
        grid_spec=pltpu.PrefetchScalarGridSpec(
            num_scalar_prefetch=0,
            grid=grid,
            in_specs=[
                pl.BlockSpec((B, in_p), lambda ki, oi: (0, 0)),    # x (resident)
                pl.BlockSpec((th, in_p), lambda ki, oi: (ki, 0)),  # W1 hidden tile
                pl.BlockSpec((to, th), lambda ki, oi: (oi, ki)),   # W2 tile
                pl.BlockSpec((1, th), lambda ki, oi: (0, ki)),     # gamma tile
                pl.BlockSpec((1, th), lambda ki, oi: (0, ki)),     # beta tile
            ],
            # Full-width output block, constant index -> written back to HBM once.
            out_specs=pl.BlockSpec((B, out_p), lambda ki, oi: (0, 0)),
            scratch_shapes=[
                pltpu.VMEM((B, th), w2p.dtype),        # cached h_act for current ki
                pltpu.VMEM((B, out_p), jnp.float32),   # full f32 output accumulator
            ],
        ),
        compiler_params=pltpu.CompilerParams(
            # Both "arbitrary": ki is the reduction; oi must not be megacore-sharded
            # because the oi==0 h_act-cache guard would break on the second core.
            dimension_semantics=("arbitrary", "arbitrary"),
            vmem_limit_bytes=vmem_limit,
        ),
        cost_estimate=cost,
    )(xp, w1p, w2p, gp, bp)

    return out_padded[:, :out_dim]


if __name__ == "__main__":
    batch, input_dim, hidden_dim, output_dim = 8, 16, 32, 8

    key = jax.random.PRNGKey(0)
    kx, kw1, kw2 = jax.random.split(key, 3)

    x = jax.random.normal(kx, (batch, input_dim), dtype=jnp.float32)
    # Parameter shapes match nn.Linear / nn.BatchNorm1d.
    w1 = jax.random.normal(kw1, (hidden_dim, input_dim), dtype=jnp.float32) * 0.1
    w2 = jax.random.normal(kw2, (output_dim, hidden_dim), dtype=jnp.float32) * 0.1
    gamma = jnp.ones((hidden_dim,), dtype=jnp.float32)   # BatchNorm1d weight
    beta = jnp.zeros((hidden_dim,), dtype=jnp.float32)   # BatchNorm1d bias

    # Pure-JAX reference (same math, training-mode batch norm).
    h = x @ w1.T
    mean = h.mean(axis=0, keepdims=True)
    var = ((h - mean) ** 2).mean(axis=0, keepdims=True)
    h_ref = jnp.maximum((h - mean) / jnp.sqrt(var + EPS) * gamma + beta, 0.0)
    ref = h_ref @ w2.T

    # Exact-numerics path (f32 MXU operands).
    out_f32 = mlp_forward(x, w1, w2, gamma, beta, compute_dtype=jnp.float32)
    jax.block_until_ready(out_f32)
    assert out_f32.shape == ref.shape, (out_f32.shape, ref.shape)
    assert jnp.allclose(out_f32, ref, atol=1e-4, rtol=1e-4), "f32 mismatch vs reference"

    # Default fast path (bf16 MXU operands, f32 accumulation / BN math).
    out_bf16 = mlp_forward(x, w1, w2, gamma, beta)
    jax.block_until_ready(out_bf16)
    assert out_bf16.shape == ref.shape, (out_bf16.shape, ref.shape)
    assert jnp.allclose(out_bf16, ref, atol=1e-1, rtol=1e-1), "bf16 mismatch vs reference"

    print("KERNEL_OK")
</pallas_src>

<mosaic_0001>
module attributes {stable_mosaic.version = 11 : i64} {
  func.func @mlp_kernel(%arg0: i32, %arg1: i32, %arg2: memref<8x128xf32, #tpu.memory_space<vmem>>, %arg3: memref<128x128xf32, #tpu.memory_space<vmem>>, %arg4: memref<128x128xf32, #tpu.memory_space<vmem>>, %arg5: memref<1x128xf32, #tpu.memory_space<vmem>>, %arg6: memref<1x128xf32, #tpu.memory_space<vmem>>, %arg7: memref<8x128xf32, #tpu.memory_space<vmem>>, %arg8: memref<8x128xf32, #tpu.memory_space<vmem>>, %arg9: memref<8x128xf32, #tpu.memory_space<vmem>>) attributes {dimension_semantics = [#tpu.dimension_semantics<arbitrary>, #tpu.dimension_semantics<arbitrary>], iteration_bounds = array<i64: 1, 1>, scalar_prefetch = 0 : i64, scratch_operands = 2 : i64, tpu.core_type = #tpu.core_type<tc>, window_params = [{pipeline_mode = #tpu.pipeline_mode<synchronous>, transform_indices = @transform_0, window_bounds = array<i64: 8, 128>}, {transform_indices = @transform_1, window_bounds = array<i64: 128, 128>}, {transform_indices = @transform_2, window_bounds = array<i64: 128, 128>}, {transform_indices = @transform_3, window_bounds = array<i64: 1, 128>}, {transform_indices = @transform_4, window_bounds = array<i64: 1, 128>}, {pipeline_mode = #tpu.pipeline_mode<synchronous>, transform_indices = @transform_5, window_bounds = array<i64: 8, 128>}]} {
    %c0_i32 = arith.constant 0 : i32
    %0 = arith.cmpi eq, %arg0, %c0_i32 : i32
    %c0_i32_0 = arith.constant 0 : i32
    %1 = arith.cmpi eq, %arg1, %c0_i32_0 : i32
    %2 = arith.andi %0, %1 : i1
    %3 = arith.extui %2 : i1 to i32
    %c0_i32_1 = arith.constant 0 : i32
    %4 = arith.cmpi ne, %3, %c0_i32_1 : i32
    scf.if %4 {
      %cst_12 = arith.constant 0.000000e+00 : f32
      %23 = vector.broadcast %cst_12 : f32 to vector<8x128xf32>
      %c0_13 = arith.constant 0 : index
      %c0_14 = arith.constant 0 : index
      %24 = vector.load %arg9[%c0_13, %c0_14] : memref<8x128xf32, #tpu.memory_space<vmem>>, vector<8x128xf32>
      tpu.vector_store %arg9[%c0_13, %c0_14], %23 {strides = array<i32>} : memref<8x128xf32, #tpu.memory_space<vmem>>, vector<8x128xf32>,
    } else {
    }
    %c0_i32_2 = arith.constant 0 : i32
    %5 = arith.cmpi eq, %arg1, %c0_i32_2 : i32
    %6 = arith.extui %5 : i1 to i32
    %c0_i32_3 = arith.constant 0 : i32
    %7 = arith.cmpi ne, %6, %c0_i32_3 : i32
    scf.if %7 {
      %c0_12 = arith.constant 0 : index
      %c0_13 = arith.constant 0 : index
      %23 = vector.load %arg2[%c0_12, %c0_13] : memref<8x128xf32, #tpu.memory_space<vmem>>, vector<8x128xf32>
      %c0_14 = arith.constant 0 : index
      %c0_15 = arith.constant 0 : index
      %24 = vector.load %arg3[%c0_14, %c0_15] : memref<128x128xf32, #tpu.memory_space<vmem>>, vector<128x128xf32>
      %cst_16 = arith.constant dense<0.000000e+00> : vector<8x128xf32>
      %25 = tpu.matmul %23, %24, %cst_16 {dimension_numbers = #tpu.dot_dimension_numbers<[1], [1], [0], [0], [0, 0, 1, 0], [], []>} : vector<8x128xf32>, vector<128x128xf32>, vector<8x128xf32> -> vector<8x128xf32>
      %cst_17 = arith.constant dense<0.000000e+00> : vector<128xf32>
      %26 = vector.multi_reduction <add>, %25, %cst_17 [0] : vector<8x128xf32> to vector<128xf32>
      %27 = vector.shape_cast %26 : vector<128xf32> to vector<1x128xf32>
      %cst_18 = arith.constant 8.000000e+00 : f32
      %28 = vector.broadcast %cst_18 : f32 to vector<1x128xf32>
      %29 = arith.divf %27, %28 : vector<1x128xf32>
      %30 = arith.mulf %25, %25 : vector<8x128xf32>
      %cst_19 = arith.constant dense<0.000000e+00> : vector<128xf32>
      %31 = vector.multi_reduction <add>, %30, %cst_19 [0] : vector<8x128xf32> to vector<128xf32>
      %32 = vector.shape_cast %31 : vector<128xf32> to vector<1x128xf32>
      %cst_20 = arith.constant 8.000000e+00 : f32
      %33 = vector.broadcast %cst_20 : f32 to vector<1x128xf32>
      %34 = arith.divf %32, %33 : vector<1x128xf32>
      %35 = arith.mulf %29, %29 : vector<1x128xf32>
      %36 = arith.subf %34, %35 : vector<1x128xf32>
      %cst_21 = arith.constant 0.000000e+00 : f32
      %37 = vector.broadcast %cst_21 : f32 to vector<1x128xf32>
      %38 = arith.maximumf %36, %37 : vector<1x128xf32>
      %c0_22 = arith.constant 0 : index
      %c0_23 = arith.constant 0 : index
      %39 = vector.load %arg5[%c0_22, %c0_23] : memref<1x128xf32, #tpu.memory_space<vmem>>, vector<1x128xf32>
      %cst_24 = arith.constant 9.99999974E-6 : f32
      %40 = vector.broadcast %cst_24 : f32 to vector<1x128xf32>
      %41 = arith.addf %38, %40 : vector<1x128xf32>
      %42 = math.rsqrt %41 : vector<1x128xf32>
      %43 = arith.mulf %39, %42 : vector<1x128xf32>
      %c0_25 = arith.constant 0 : index
      %c0_26 = arith.constant 0 : index
      %44 = vector.load %arg6[%c0_25, %c0_26] : memref<1x128xf32, #tpu.memory_space<vmem>>, vector<1x128xf32>
      %45 = arith.mulf %29, %43 : vector<1x128xf32>
      %46 = arith.subf %44, %45 : vector<1x128xf32>
      %47 = vector.broadcast %43 : vector<1x128xf32> to vector<8x128xf32>
      %48 = arith.mulf %25, %47 : vector<8x128xf32>
      %49 = vector.broadcast %46 : vector<1x128xf32> to vector<8x128xf32>
      %50 = arith.addf %48, %49 : vector<8x128xf32>
      %cst_27 = arith.constant 0.000000e+00 : f32
      %51 = vector.broadcast %cst_27 : f32 to vector<8x128xf32>
      %52 = arith.maximumf %50, %51 : vector<8x128xf32>
      %c0_28 = arith.constant 0 : index
      %c0_29 = arith.constant 0 : index
      %53 = vector.load %arg8[%c0_28, %c0_29] : memref<8x128xf32, #tpu.memory_space<vmem>>, vector<8x128xf32>
      tpu.vector_store %arg8[%c0_28, %c0_29], %52 {strides = array<i32>} : memref<8x128xf32, #tpu.memory_space<vmem>>, vector<8x128xf32>,
    } else {
    }
    %c0 = arith.constant 0 : index
    %c0_4 = arith.constant 0 : index
    %8 = vector.load %arg8[%c0, %c0_4] : memref<8x128xf32, #tpu.memory_space<vmem>>, vector<8x128xf32>
    %c0_5 = arith.constant 0 : index
    %c0_6 = arith.constant 0 : index
    %9 = vector.load %arg4[%c0_5, %c0_6] : memref<128x128xf32, #tpu.memory_space<vmem>>, vector<128x128xf32>
    %cst = arith.constant dense<0.000000e+00> : vector<8x128xf32>
    %10 = tpu.matmul %8, %9, %cst {dimension_numbers = #tpu.dot_dimension_numbers<[1], [1], [0], [0], [0, 0, 1, 0], [], []>} : vector<8x128xf32>, vector<128x128xf32>, vector<8x128xf32> -> vector<8x128xf32>
    %c128_i32 = arith.constant 128 : i32
    %11 = arith.muli %arg1, %c128_i32 : i32
    %12 = tpu.assume_multiple %11, 128 : i32
    %c0_7 = arith.constant 0 : index
    %13 = arith.index_cast %12 : i32 to index
    %14 = vector.load %arg9[%c0_7, %13] : memref<8x128xf32, #tpu.memory_space<vmem>>, vector<8x128xf32>
    %15 = arith.addf %14, %10 : vector<8x128xf32>
    %c0_8 = arith.constant 0 : index
    %16 = arith.index_cast %12 : i32 to index
    %17 = vector.load %arg9[%c0_8, %16] : memref<8x128xf32, #tpu.memory_space<vmem>>, vector<8x128xf32>
    tpu.vector_store %arg9[%c0_8, %16], %15 {strides = array<i32>} : memref<8x128xf32, #tpu.memory_space<vmem>>, vector<8x128xf32>,
    %c0_i32_9 = arith.constant 0 : i32
    %18 = arith.cmpi eq, %arg0, %c0_i32_9 : i32
    %c0_i32_10 = arith.constant 0 : i32
    %19 = arith.cmpi eq, %arg1, %c0_i32_10 : i32
    %20 = arith.andi %18, %19 : i1
    %21 = arith.extui %20 : i1 to i32
    %c0_i32_11 = arith.constant 0 : i32
    %22 = arith.cmpi ne, %21, %c0_i32_11 : i32
    scf.if %22 {
      %c0_12 = arith.constant 0 : index
      %c0_13 = arith.constant 0 : index
      %23 = vector.load %arg9[%c0_12, %c0_13] : memref<8x128xf32, #tpu.memory_space<vmem>>, vector<8x128xf32>
      %c0_14 = arith.constant 0 : index
      %c0_15 = arith.constant 0 : index
      %24 = vector.load %arg7[%c0_14, %c0_15] : memref<8x128xf32, #tpu.memory_space<vmem>>, vector<8x128xf32>
      tpu.vector_store %arg7[%c0_14, %c0_15], %23 {strides = array<i32>} : memref<8x128xf32, #tpu.memory_space<vmem>>, vector<8x128xf32>,
    } else {
    }
    return
  }
  func.func @transform_0(%arg0: i32, %arg1: i32) -> (i32, i32) {
    %c0_i32 = arith.constant 0 : i32
    %c0_i32_0 = arith.constant 0 : i32
    %c0_i32_1 = arith.constant 0 : i32
    return %c0_i32, %c0_i32_0 : i32, i32
  }
  func.func @transform_1(%arg0: i32, %arg1: i32) -> (i32, i32) {
    %c0_i32 = arith.constant 0 : i32
    %c0_i32_0 = arith.constant 0 : i32
    return %arg0, %c0_i32 : i32, i32
  }
  func.func @transform_2(%arg0: i32, %arg1: i32) -> (i32, i32) {
    %c0_i32 = arith.constant 0 : i32
    return %arg1, %arg0 : i32, i32
  }
  func.func @transform_3(%arg0: i32, %arg1: i32) -> (i32, i32) {
    %c0_i32 = arith.constant 0 : i32
    %c0_i32_0 = arith.constant 0 : i32
    return %c0_i32, %arg0 : i32, i32
  }
  func.func @transform_4(%arg0: i32, %arg1: i32) -> (i32, i32) {
    %c0_i32 = arith.constant 0 : i32
    %c0_i32_0 = arith.constant 0 : i32
    return %c0_i32, %arg0 : i32, i32
  }
  func.func @transform_5(%arg0: i32, %arg1: i32) -> (i32, i32) {
    %c0_i32 = arith.constant 0 : i32
    %c0_i32_0 = arith.constant 0 : i32
    %c0_i32_1 = arith.constant 0 : i32
    return %c0_i32, %c0_i32_0 : i32, i32
  }
}

</mosaic_0001>

<llo_original>
// kernel: tpu_custom_call.1
$region0: #{tpu_custom_call.1}
  #allocation0 [shape = 'u32[]', space=smem, size = 0x4, offset = 0x4, fixed_abs, tag = 'smem constant byte address 0x4 - core index']
  #allocation1 [shape = 'u32[144,128]{1,0:T(1,128)}', space=vmem, size = 0x12000, scoped, tag = 'internal scratch']
  #allocation2 [shape = 'f32[8,128]{1,0:T(8,128)}', space=vmem, size = 0x1000, scoped, tag = 'scratch operand']
  #allocation3 [shape = 'f32[8,128]{1,0:T(8,128)}', space=vmem, size = 0x1000, scoped, tag = 'scratch operand']
  %s0 = inlined_call_operand.hbm [shape: f32[8,128], index: 0, kind: input, shape index: {}]
  %s1 = inlined_call_operand.hbm [shape: f32[128,128], index: 1, kind: input, shape index: {}]
  %s2 = inlined_call_operand.hbm [shape: f32[128,128], index: 2, kind: input, shape index: {}]
  %s3 = inlined_call_operand.vmem [shape: f32[1,128], index: 3, kind: input, shape index: {}]
  %s4 = inlined_call_operand.vmem [shape: f32[1,128], index: 4, kind: input, shape index: {}]
  %s5 = inlined_call_operand.hbm [shape: f32[8,128], index: 5, kind: output, shape index: {}]
  %s6 = sld [smem:[#allocation0]]
  $region54: #{tpu_custom_call.1} parent=0
    _
  %s8 = ssub.s32 1, %s6
  %s9 = scalar_select 0, %s8, %s6
  $region1: #{tpu_custom_call.1} parent=0
    #allocation4 [shape = 'u8[4096]{0}', space=vmem, size = 0x1000, scoped, tag = 'input window, operand 0, single buffered']
    #allocation5 [shape = 's32[1]{0}', space=sflag, size = 0x4, scoped, tag = 'scoped memory for tpu_custom_call.1']
    #allocation6 [shape = 's32[1]{0}', space=sflag, size = 0x4, scoped, tag = 'scoped memory for tpu_custom_call.1']
    #allocation7 [shape = 'u8[65536]{0}', space=vmem, size = 0x10000, scoped, tag = 'input window, operand 1, single buffered']
    #allocation8 [shape = 's32[1]{0}', space=sflag, size = 0x4, scoped, tag = 'scoped memory for tpu_custom_call.1']
    #allocation9 [shape = 'u8[65536]{0}', space=vmem, size = 0x10000, scoped, tag = 'input window, operand 2, single buffered']
    #allocation10 [shape = 'u8[4096]{0}', space=vmem, size = 0x1000, scoped, tag = 'output window, operand 0, single buffered']
    %10 = vsyncpa [#allocation5], 0
    %11 = vsyncpa [#allocation8], 0
    %12 = vsyncpa [#allocation6], 0
    // Predicated region
    $region2: #{tpu_custom_call.1} parent=1 // pred_check
      _
    $region3: #{tpu_custom_call.1} parent=1 // pred_check_branch
      %14 = sbr.rel (0) target = $region5
    $region4: #{tpu_custom_call.1} parent=1 // pred_region
      %s16 = ssub.s32 128, 128
      %17 = vsyncadd [#allocation5], %s16
      %s19 = sshll.u32 [#allocation4], 4
      %s20 = int_to_ptr.vmem [resolvable:$true] %s19
      %22 = dma.hbm_to_vmem [thread:$0]  %s0, 128, %s20, [#allocation5]
    $region5: #{tpu_custom_call.1} parent=1 // pred_fallthru
      _
    // Predicated region
    $region6: #{tpu_custom_call.1} parent=1 // pred_check
      _
    $region7: #{tpu_custom_call.1} parent=1 // pred_check_branch
      %24 = sbr.rel (0) target = $region9
    $region8: #{tpu_custom_call.1} parent=1 // pred_region
      %s26 = ssub.s32 2048, 2048
      %27 = vsyncadd [#allocation8], %s26
      %s28 = sshll.u32 [#allocation7], 4
      %s29 = int_to_ptr.vmem [resolvable:$true] %s28
      %34 = dma.hbm_to_vmem [thread:$0]  %s1, 2048, %s29, [#allocation8], 128, 128, 8
    $region9: #{tpu_custom_call.1} parent=1 // pred_fallthru
      _
    // Predicated region
    $region10: #{tpu_custom_call.1} parent=1 // pred_check
      _
    $region11: #{tpu_custom_call.1} parent=1 // pred_check_branch
      %36 = sbr.rel (0) target = $region13
    $region12: #{tpu_custom_call.1} parent=1 // pred_region
      %s38 = ssub.s32 2048, 2048
      %39 = vsyncadd [#allocation8], %s38
      %s40 = sshll.u32 [#allocation9], 4
      %s41 = int_to_ptr.vmem [resolvable:$true] %s40
      %46 = dma.hbm_to_vmem [thread:$0]  %s2, 2048, %s41, [#allocation8], 128, 128, 8
    $region13: #{tpu_custom_call.1} parent=1 // pred_fallthru
      _
    // Predicated region
    $region14: #{tpu_custom_call.1} parent=1 // pred_check
      _
    $region15: #{tpu_custom_call.1} parent=1 // pred_check_branch
      %48 = sbr.rel (0) target = $region17
    $region16: #{tpu_custom_call.1} parent=1 // pred_region
      _
    $region17: #{tpu_custom_call.1} parent=1 // pred_fallthru
      _
    // Predicated region
    $region18: #{tpu_custom_call.1} parent=1 // pred_check
      _
    $region19: #{tpu_custom_call.1} parent=1 // pred_check_branch
      %50 = sbr.rel (0) target = $region21
    $region20: #{tpu_custom_call.1} parent=1 // pred_region
      _
    $region21: #{tpu_custom_call.1} parent=1 // pred_fallthru
      _
    // Predicated region
    $region22: #{tpu_custom_call.1} parent=1 // pred_check
      _
    $region23: #{tpu_custom_call.1} parent=1 // pred_check_branch
      %52 = sbr.rel (0) target = $region25
    $region24: #{tpu_custom_call.1} parent=1 // pred_region
      %53 = dma.done [#allocation5], 128
    $region25: #{tpu_custom_call.1} parent=1 // pred_fallthru
      _
    // Predicated region
    $region26: #{tpu_custom_call.1} parent=1 // pred_check
      _
    $region27: #{tpu_custom_call.1} parent=1 // pred_check_branch
      %55 = sbr.rel (0) target = $region29
    $region28: #{tpu_custom_call.1} parent=1 // pred_region
      %56 = dma.done [#allocation8], 2048
    $region29: #{tpu_custom_call.1} parent=1 // pred_fallthru
      _
    // Predicated region
    $region30: #{tpu_custom_call.1} parent=1 // pred_check
      _
    $region31: #{tpu_custom_call.1} parent=1 // pred_check_branch
      %58 = sbr.rel (0) target = $region33
    $region32: #{tpu_custom_call.1} parent=1 // pred_region
      %59 = dma.done [#allocation8], 2048
    $region33: #{tpu_custom_call.1} parent=1 // pred_fallthru
      _
    %p60 = scmp.eq.s32.totalorder 0, 0
    %p61 = scmp.eq.s32.totalorder 0, 0
    %p62 = pnand %p60, %p61
    %p63 = pneg %p62
    // Predicated region
    $region34: #{tpu_custom_call.1} parent=1 // pred_check
      _
    $region35: #{tpu_custom_call.1} parent=1 // pred_check_branch
      %65 = sbr.rel (%p62) target = $region37
    $region36: #{tpu_custom_call.1} parent=1 // pred_region
      %66 = vst [vmem:[#allocation3] sm:$0xff] 0.0
    $region37: #{tpu_custom_call.1} parent=1 // pred_fallthru
      _
    // Predicated region
    $region38: #{tpu_custom_call.1} parent=1 // pred_check
      %p67 = pneg %p61
    $region39: #{tpu_custom_call.1} parent=1 // pred_check_branch
      %69 = sbr.rel (%p67) target = $region41
    $region40: #{tpu_custom_call.1} parent=1 // pred_region
      %v70 = vld [vmem:[#allocation4] sm:$0xff]
      %v71 = vld [vmem:[#allocation7] sm:$0xff]
      %v72 = vld [vmem:[#allocation7 + $0x8] sm:$0xff]
      %v73 = vld [vmem:[#allocation7 + $0x10] sm:$0xff]
      %v74 = vld [vmem:[#allocation7 + $0x18] sm:$0xff]
      %v75 = vld [vmem:[#allocation7 + $0x20] sm:$0xff]
      %v76 = vld [vmem:[#allocation7 + $0x28] sm:$0xff]
      %v77 = vld [vmem:[#allocation7 + $0x30] sm:$0xff]
      %v78 = vld [vmem:[#allocation7 + $0x38] sm:$0xff]
      %v79 = vld [vmem:[#allocation7 + $0x40] sm:$0xff]
      %v80 = vld [vmem:[#allocation7 + $0x48] sm:$0xff]
      %v81 = vld [vmem:[#allocation7 + $0x50] sm:$0xff]
      %v82 = vld [vmem:[#allocation7 + $0x58] sm:$0xff]
      %v83 = vld [vmem:[#allocation7 + $0x60] sm:$0xff]
      %v84 = vld [vmem:[#allocation7 + $0x68] sm:$0xff]
      %v85 = vld [vmem:[#allocation7 + $0x70] sm:$0xff]
      %v86 = vld [vmem:[#allocation7 + $0x78] sm:$0xff]
      %87 = vmatprep.subr.mxu0 0.0
      %88 = vmatpush1.xpose.msra.mxu0 %v71
      %89 = vmatprep.subr.mxu0 0.0
      %90 = vmatpush1.xpose.msra.mxu0 %v72
      %91 = vmatprep.subr.mxu0 0.0
      %92 = vmatpush1.xpose.msra.mxu0 %v73
      %93 = vmatprep.subr.mxu0 0.0
      %94 = vmatpush1.xpose.msra.mxu0 %v74
      %95 = vmatprep.subr.mxu0 0.0
      %96 = vmatpush1.xpose.msra.mxu0 %v75
      %97 = vmatprep.subr.mxu0 0.0
      %98 = vmatpush1.xpose.msra.mxu0 %v76
      %99 = vmatprep.subr.mxu0 0.0
      %100 = vmatpush1.xpose.msra.mxu0 %v77
      %101 = vmatprep.subr.mxu0 0.0
      %102 = vmatpush1.xpose.msra.mxu0 %v78
      %103 = vmatprep.subr.mxu0 0.0
      %104 = vmatpush1.xpose.msra.mxu0 %v79
      %105 = vmatprep.subr.mxu0 0.0
      %106 = vmatpush1.xpose.msra.mxu0 %v80
      %107 = vmatprep.subr.mxu0 0.0
      %108 = vmatpush1.xpose.msra.mxu0 %v81
      %109 = vmatprep.subr.mxu0 0.0
      %110 = vmatpush1.xpose.msra.mxu0 %v82
      %111 = vmatprep.subr.mxu0 0.0
      %112 = vmatpush1.xpose.msra.mxu0 %v83
      %113 = vmatprep.subr.mxu0 0.0
      %114 = vmatpush1.xpose.msra.mxu0 %v84
      %115 = vmatprep.subr.mxu0 0.0
      %116 = vmatpush1.xpose.msra.mxu0 %v85
      %117 = vmatprep.subr.mxu0 0.0
      %118 = vmatpush1.xpose.msra.mxu0 %v86
      %119 = vmatprep.subr.mxu0 0.0
      %120 = vmatpush1.xpose.msra.mxu0 0.0
      %121 = vmatprep.subr.mxu0 0.0
      %122 = vmatpush1.xpose.msra.mxu0 0.0
      %123 = vmatprep.subr.mxu0 0.0
      %124 = vmatpush1.xpose.msra.mxu0 0.0
      %125 = vmatprep.subr.mxu0 0.0
      %126 = vmatpush1.xpose.msra.mxu0 0.0
      %127 = vmatprep.subr.mxu0 0.0
      %128 = vmatpush1.xpose.msra.mxu0 0.0
      %129 = vmatprep.subr.mxu0 0.0
      %130 = vmatpush1.xpose.msra.mxu0 0.0
      %131 = vmatprep.subr.mxu0 0.0
      %132 = vmatpush1.xpose.msra.mxu0 0.0
      %133 = vmatprep.subr.mxu0 0.0
      %134 = vmatpush1.xpose.msra.mxu0 0.0
      %135 = vmatprep.subr.mxu0 0.0
      %136 = vmatpush1.xpose.msra.mxu0 0.0
      %137 = vmatprep.subr.mxu0 0.0
      %138 = vmatpush1.xpose.msra.mxu0 0.0
      %139 = vmatprep.subr.mxu0 0.0
      %140 = vmatpush1.xpose.msra.mxu0 0.0
      %141 = vmatprep.subr.mxu0 0.0
      %142 = vmatpush1.xpose.msra.mxu0 0.0
      %143 = vmatprep.subr.mxu0 0.0
      %144 = vmatpush1.xpose.msra.mxu0 0.0
      %145 = vmatprep.subr.mxu0 0.0
      %146 = vmatpush1.xpose.msra.mxu0 0.0
      %147 = vmatprep.subr.mxu0 0.0
      %148 = vmatpush1.xpose.msra.mxu0 0.0
      %149 = vmatprep.subr.mxu0 0.0
      %150 = vmatpush1.xpose.msra.mxu0 0.0
      %151 = vmatprep.mubr.f32.mxu0 0.0
      %152 = vmatmul.mubr.f32.gmra.mrb[0].mxu0 %v70
      %v153 = vpop.f32.mrb[0].mxu0
      %v154 = vadd.f32 0.0, %v153
      %v155 = vpop.f32.mrb[0].mxu0
      %156 = vdwg.mxu0
      %v157 = vrot.slane %v154, 4
      %v158 = vadd.f32 %v154, %v157
      %v159 = vrot.slane %v158, 2
      %v160 = vadd.f32 %v158, %v159
      %v161 = vrot.slane %v160, 1
      %v162 = vadd.f32 %v160, %v161
      %v163 = vrcp.pop 8.0
      %v164 = vmul.f32 %v162, %v163
      %v165 = vmul.f32 %v154, %v154
      %v166 = vrot.slane %v165, 4
      %v167 = vadd.f32 %v165, %v166
      %v168 = vrot.slane %v167, 2
      %v169 = vadd.f32 %v167, %v168
      %v170 = vrot.slane %v169, 1
      %v171 = vadd.f32 %v169, %v170
      %v172 = vmul.f32 %v171, %v163
      %v173 = vmul.f32 %v164, %v164
      %v174 = vsub.f32 %v172, %v173
      %v175 = vmax.f32 %v174, 0.0
      %v176 = vld [vmem:[%s3] sm:$0x1]
      %v177 = vadd.f32 %v175, 1e-05
      %v178 = vrsqrt.pop %v177
      %v179 = vmul.f32 %v176, %v178
      %v180 = vld [vmem:[%s4] sm:$0x1]
      %v181 = vmul.f32 %v164, %v179
      %v182 = vsub.f32 %v180, %v181
      %v184 = vlaneseq
      %v185 = vshrl.u32 %v184, 7
      %v186 = vsub.s32 0, %v185
      %v187 = vrot.slane %v179, %v186
      %v189 = vmul.f32 %v154, %v187
      %v191 = vlaneseq
      %v192 = vshrl.u32 %v191, 7
      %v193 = vsub.s32 0, %v192
      %v194 = vrot.slane %v182, %v193
      %v196 = vadd.f32 %v189, %v194
      %v197 = vmax.f32 %v196, 0.0
      %198 = vst [vmem:[#allocation2] sm:$0xff] %v197
    $region41: #{tpu_custom_call.1} parent=1 // pred_fallthru
      _
    %v199 = vld [vmem:[#allocation2] sm:$0xff]
    %v200 = vld [vmem:[#allocation9] sm:$0xff]
    %v201 = vld [vmem:[#allocation9 + $0x8] sm:$0xff]
    %v202 = vld [vmem:[#allocation9 + $0x10] sm:$0xff]
    %v203 = vld [vmem:[#allocation9 + $0x18] sm:$0xff]
    %v204 = vld [vmem:[#allocation9 + $0x20] sm:$0xff]
    %v205 = vld [vmem:[#allocation9 + $0x28] sm:$0xff]
    %v206 = vld [vmem:[#allocation9 + $0x30] sm:$0xff]
    %v207 = vld [vmem:[#allocation9 + $0x38] sm:$0xff]
    %v208 = vld [vmem:[#allocation9 + $0x40] sm:$0xff]
    %v209 = vld [vmem:[#allocation9 + $0x48] sm:$0xff]
    %v210 = vld [vmem:[#allocation9 + $0x50] sm:$0xff]
    %v211 = vld [vmem:[#allocation9 + $0x58] sm:$0xff]
    %v212 = vld [vmem:[#allocation9 + $0x60] sm:$0xff]
    %v213 = vld [vmem:[#allocation9 + $0x68] sm:$0xff]
    %v214 = vld [vmem:[#allocation9 + $0x70] sm:$0xff]
    %v215 = vld [vmem:[#allocation9 + $0x78] sm:$0xff]
    %216 = vmatprep.subr.mxu0 0.0
    %217 = vmatpush1.xpose.msra.mxu0 %v200
    %218 = vmatprep.subr.mxu0 0.0
    %219 = vmatpush1.xpose.msra.mxu0 %v201
    %220 = vmatprep.subr.mxu0 0.0
    %221 = vmatpush1.xpose.msra.mxu0 %v202
    %222 = vmatprep.subr.mxu0 0.0
    %223 = vmatpush1.xpose.msra.mxu0 %v203
    %224 = vmatprep.subr.mxu0 0.0
    %225 = vmatpush1.xpose.msra.mxu0 %v204
    %226 = vmatprep.subr.mxu0 0.0
    %227 = vmatpush1.xpose.msra.mxu0 %v205
    %228 = vmatprep.subr.mxu0 0.0
    %229 = vmatpush1.xpose.msra.mxu0 %v206
    %230 = vmatprep.subr.mxu0 0.0
    %231 = vmatpush1.xpose.msra.mxu0 %v207
    %232 = vmatprep.subr.mxu0 0.0
    %233 = vmatpush1.xpose.msra.mxu0 %v208
    %234 = vmatprep.subr.mxu0 0.0
    %235 = vmatpush1.xpose.msra.mxu0 %v209
    %236 = vmatprep.subr.mxu0 0.0
    %237 = vmatpush1.xpose.msra.mxu0 %v210
    %238 = vmatprep.subr.mxu0 0.0
    %239 = vmatpush1.xpose.msra.mxu0 %v211
    %240 = vmatprep.subr.mxu0 0.0
    %241 = vmatpush1.xpose.msra.mxu0 %v212
    %242 = vmatprep.subr.mxu0 0.0
    %243 = vmatpush1.xpose.msra.mxu0 %v213
    %244 = vmatprep.subr.mxu0 0.0
    %245 = vmatpush1.xpose.msra.mxu0 %v214
    %246 = vmatprep.subr.mxu0 0.0
    %247 = vmatpush1.xpose.msra.mxu0 %v215
    %248 = vmatprep.subr.mxu0 0.0
    %249 = vmatpush1.xpose.msra.mxu0 0.0
    %250 = vmatprep.subr.mxu0 0.0
    %251 = vmatpush1.xpose.msra.mxu0 0.0
    %252 = vmatprep.subr.mxu0 0.0
    %253 = vmatpush1.xpose.msra.mxu0 0.0
    %254 = vmatprep.subr.mxu0 0.0
    %255 = vmatpush1.xpose.msra.mxu0 0.0
    %256 = vmatprep.subr.mxu0 0.0
    %257 = vmatpush1.xpose.msra.mxu0 0.0
    %258 = vmatprep.subr.mxu0 0.0
    %259 = vmatpush1.xpose.msra.mxu0 0.0
    %260 = vmatprep.subr.mxu0 0.0
    %261 = vmatpush1.xpose.msra.mxu0 0.0
    %262 = vmatprep.subr.mxu0 0.0
    %263 = vmatpush1.xpose.msra.mxu0 0.0
    %264 = vmatprep.subr.mxu0 0.0
    %265 = vmatpush1.xpose.msra.mxu0 0.0
    %266 = vmatprep.subr.mxu0 0.0
    %267 = vmatpush1.xpose.msra.mxu0 0.0
    %268 = vmatprep.subr.mxu0 0.0
    %269 = vmatpush1.xpose.msra.mxu0 0.0
    %270 = vmatprep.subr.mxu0 0.0
    %271 = vmatpush1.xpose.msra.mxu0 0.0
    %272 = vmatprep.subr.mxu0 0.0
    %273 = vmatpush1.xpose.msra.mxu0 0.0
    %274 = vmatprep.subr.mxu0 0.0
    %275 = vmatpush1.xpose.msra.mxu0 0.0
    %276 = vmatprep.subr.mxu0 0.0
    %277 = vmatpush1.xpose.msra.mxu0 0.0
    %278 = vmatprep.subr.mxu0 0.0
    %279 = vmatpush1.xpose.msra.mxu0 0.0
    %280 = vmatprep.mubr.f32.mxu0 0.0
    %281 = vmatmul.mubr.f32.gmra.mrb[0].mxu0 %v199
    %v282 = vpop.f32.mrb[0].mxu0
    %v283 = vadd.f32 0.0, %v282
    %v284 = vpop.f32.mrb[0].mxu0
    %285 = vdwg.mxu0
    %s286 = smul.u32 0, 128
    %s287 = sshra.s32 %s286, 7
    %s288 = sand.u32 %s286, 127
    %s289 = scalar_lea.vmem [#allocation3], %s287
    %v290 = vld [vmem:[%s289] sm:$0xff]
    %v291 = vadd.f32 %v290, %v283
    %292 = vst [vmem:[%s289] sm:$0xff] %v291
    // Predicated region
    $region42: #{tpu_custom_call.1} parent=1 // pred_check
      _
    $region43: #{tpu_custom_call.1} parent=1 // pred_check_branch
      %294 = sbr.rel (%p62) target = $region45
    $region44: #{tpu_custom_call.1} parent=1 // pred_region
      %v295 = vld [vmem:[#allocation3] sm:$0xff]
      %296 = vst [vmem:[#allocation10] sm:$0xff] %v295
    $region45: #{tpu_custom_call.1} parent=1 // pred_fallthru
      _
    // Predicated region
    $region46: #{tpu_custom_call.1} parent=1 // pred_check
      _
    $region47: #{tpu_custom_call.1} parent=1 // pred_check_branch
      %298 = sbr.rel (0) target = $region49
    $region48: #{tpu_custom_call.1} parent=1 // pred_region
      %s300 = ssub.s32 128, 128
      %301 = vsyncadd [#allocation6], %s300
      %s303 = sshll.u32 [#allocation10], 4
      %s304 = int_to_ptr.vmem [resolvable:$true] %s303
      %306 = dma.vmem_to_hbm [thread:$0]  %s304, 128, %s5, [#allocation6]
    $region49: #{tpu_custom_call.1} parent=1 // pred_fallthru
      _
    // Predicated region
    $region50: #{tpu_custom_call.1} parent=1 // pred_check
      _
    $region51: #{tpu_custom_call.1} parent=1 // pred_check_branch
      %308 = sbr.rel (0) target = $region53
    $region52: #{tpu_custom_call.1} parent=1 // pred_region
      %309 = dma.done [#allocation6], 128
    $region53: #{tpu_custom_call.1} parent=1 // pred_fallthru
      _
    %310 = vsyncpa [#allocation5], 1
    %311 = vsyncpa [#allocation8], 1
    %312 = vsyncpa [#allocation6], 1

</llo_original>
